<compile_context>
chip_gen: v6e
topology: v6e:2x2x1
jax: 0.10.0
libtpu: 0.0.40
codegen_flags: <defaults>
</compile_context>

<pallas_src>
import jax
import jax.numpy as jnp
from jax.experimental import pallas as pl
from jax.experimental.pallas import tpu as pltpu


def _intweight_kernel(alpha_ref, x_ref, o_ref):
    # alpha_ref: (1,) f32 scalar-prefetch ref (SMEM); x_ref/o_ref: lane-dense VMEM tiles.
    # Cast-then-multiply matches PyTorch's 0-dim float promotion (see header note).
    alpha = alpha_ref[0].astype(x_ref.dtype)
    o_ref[...] = x_ref[...] * alpha


def _run_2d(x2d, alpha_arr):
    """Streams a lane-dense (rows, width) slab through the multiply kernel."""
    rows, width = x2d.shape
    dtype = x2d.dtype
    itemsize = jnp.dtype(dtype).itemsize
    # Sublane granularity follows dtype packing: 8 rows (4-byte), 16 (2-byte), 32 (1-byte).
    sub = max(8, 32 // itemsize)

    total_bytes = rows * width * itemsize

    # ~2 MiB tiles: big enough to amortize per-step overhead near the HBM
    # roofline on v6e/v7x, small enough that double-buffered in+out (~8 MiB
    # resident) fits v5e's 16 MiB scoped default and v7x's 32 MiB default.
    TILE_BYTES = 2 << 20
    target_rows = max(sub, TILE_BYTES // (width * itemsize))
    tile_r = max(sub, (target_rows // sub) * sub)

    if total_bytes <= (512 << 10):
        # Small slab: a single full-extent block (always a legal block shape);
        # pipelining / megacore split would be pure overhead here.
        tile_r = rows
        grid = 1
    else:
        # Guarantee >= 2 grid steps so v7x's two TensorCores both get work
        # (the grid axis is marked "parallel").  rows > sub is guaranteed here
        # because total_bytes > 512 KiB and width <= 2048.
        cap = max(sub, ((rows - 1) // sub) * sub)   # largest sub-multiple < rows
        tile_r = min(tile_r, cap)
        grid = pl.cdiv(rows, tile_r)
        # Small odd grids leave one TC a whole extra step; nudge to an even
        # step count when cheap to do so.
        if grid % 2 == 1 and grid < 8:
            cand = pl.cdiv(rows, grid + 1)
            cand = max(sub, pl.cdiv(cand, sub) * sub)
            if pl.cdiv(rows, cand) % 2 == 0:
                tile_r = cand
                grid = pl.cdiv(rows, cand)

    # TODO(synk): optionally pass input_output_aliases (x2d -> out) when the
    # caller donates x, to avoid allocating a second full-size HBM buffer.
    return pl.pallas_call(
        _intweight_kernel,
        out_shape=jax.ShapeDtypeStruct((rows, width), dtype),
        grid_spec=pltpu.PrefetchScalarGridSpec(
            num_scalar_prefetch=1,                       # alpha -> SMEM, once
            grid=(grid,),
            in_specs=[
                pl.BlockSpec((tile_r, width), lambda i, alpha_ref: (i, 0)),
            ],
            out_specs=pl.BlockSpec((tile_r, width), lambda i, alpha_ref: (i, 0)),
        ),
        compiler_params=pltpu.CompilerParams(
            dimension_semantics=("parallel",),           # v7x: split rows across 2 TCs
            vmem_limit_bytes=32 << 20,                   # headroom on every generation
        ),
    )(alpha_arr, x2d)


def intweight_forward(x, alpha):
    """Computes x * alpha with a tiled, lane-dense Pallas TPU kernel.

    x: arbitrary-shape float array (e.g. NCHW activation).
    alpha: scalar parameter (kept in f32; result keeps x.dtype, like PyTorch).
    """
    if not jnp.issubdtype(x.dtype, jnp.floating):
        # The original module multiplies float activations by a float Parameter;
        # integer inputs would need f32 promotion (not implemented here).
        raise TypeError("intweight_forward expects a floating-point input")

    orig_shape = x.shape
    n = x.size
    alpha_arr = jnp.reshape(jnp.asarray(alpha, dtype=jnp.float32), (1,))

    # Widest lane width (multiple of 128) that divides n -> free reshape view,
    # no pad / slice copies through HBM.
    width = None
    for cand in (2048, 1024, 512, 256, 128):
        if n % cand == 0:
            width = cand
            break

    if width is not None:
        x2d = jnp.reshape(x, (n // width, width))
        return jnp.reshape(_run_2d(x2d, alpha_arr), orig_shape)

    # Ragged case (n % 128 != 0): run the kernel on the largest 128-divisible
    # prefix and handle the <128-element tail with a tiny plain-XLA multiply.
    alpha_x = alpha_arr[0].astype(x.dtype)
    x_flat = jnp.reshape(x, (-1,))
    main = (n // 128) * 128
    if main == 0:                                   # fewer than 128 elements total
        return jnp.reshape(x_flat * alpha_x, orig_shape)
    head = _run_2d(jnp.reshape(x_flat[:main], (-1, 128)), alpha_arr)
    tail = x_flat[main:] * alpha_x
    return jnp.reshape(jnp.concatenate([jnp.reshape(head, (-1,)), tail]), orig_shape)


if __name__ == "__main__":
    key = jax.random.PRNGKey(0)
    alpha = jnp.float32(0.1)   # PyTorch default init for the Parameter

    # Small NCHW activation consistent with the module: batch=2, channels=4, 16x16.
    x = jax.random.normal(key, (2, 4, 16, 16), dtype=jnp.float32)
    y = jax.block_until_ready(intweight_forward(x, alpha))
    assert y.shape == x.shape and y.dtype == x.dtype
    assert jnp.allclose(y, x * alpha, atol=1e-6), "mismatch vs reference (small)"

    # Larger input to exercise the tiled (grid >= 2), pipelined streaming path.
    x2 = jax.random.normal(jax.random.PRNGKey(1), (16, 64, 32, 32),
                           dtype=jnp.float32)
    y2 = jax.block_until_ready(intweight_forward(x2, alpha))
    assert jnp.allclose(y2, x2 * alpha, atol=1e-6), "mismatch vs reference (tiled)"

    # Ragged input (size not a multiple of 128): prefix kernel + tiny tail multiply.
    x3 = jax.random.normal(jax.random.PRNGKey(2), (5, 7, 13), dtype=jnp.float32)
    y3 = jax.block_until_ready(intweight_forward(x3, alpha))
    assert y3.shape == x3.shape
    assert jnp.allclose(y3, x3 * alpha, atol=1e-6), "mismatch vs reference (ragged)"

    # bf16 input: alpha is cast to bf16 before the multiply (PyTorch promotion).
    x4 = jax.random.normal(jax.random.PRNGKey(3), (2, 4, 16, 16),
                           dtype=jnp.bfloat16)
    y4 = jax.block_until_ready(intweight_forward(x4, alpha))
    assert y4.dtype == jnp.bfloat16
    assert jnp.allclose(
        y4.astype(jnp.float32),
        (x4 * jnp.asarray(alpha, dtype=jnp.bfloat16)).astype(jnp.float32),
        atol=1e-2), "mismatch vs reference (bf16)"

    print("KERNEL_OK")
</pallas_src>

<mosaic_0001>
module attributes {stable_mosaic.version = 11 : i64} {
  func.func @_intweight_kernel(%arg0: i32, %arg1: memref<1xf32, #tpu.memory_space<smem>>, %arg2: memref<1x2048xf32, #tpu.memory_space<vmem>>, %arg3: memref<1x2048xf32, #tpu.memory_space<vmem>>) attributes {dimension_semantics = [#tpu.dimension_semantics<parallel>], iteration_bounds = array<i64: 1>, scalar_prefetch = 1 : i64, scratch_operands = 0 : i64, tpu.core_type = #tpu.core_type<tc>, window_params = [{transform_indices = @transform_0, window_bounds = array<i64: 1, 2048>}, {transform_indices = @transform_1, window_bounds = array<i64: 1, 2048>}]} {
    %c0 = arith.constant 0 : index
    %0 = memref.load %arg1[%c0] : memref<1xf32, #tpu.memory_space<smem>>
    %c0_0 = arith.constant 0 : index
    %c0_1 = arith.constant 0 : index
    %1 = vector.load %arg2[%c0_0, %c0_1] : memref<1x2048xf32, #tpu.memory_space<vmem>>, vector<1x2048xf32>
    %2 = vector.broadcast %0 : f32 to vector<1x2048xf32>
    %3 = arith.mulf %1, %2 : vector<1x2048xf32>
    %c0_2 = arith.constant 0 : index
    %c0_3 = arith.constant 0 : index
    %4 = vector.load %arg3[%c0_2, %c0_3] : memref<1x2048xf32, #tpu.memory_space<vmem>>, vector<1x2048xf32>
    tpu.vector_store %arg3[%c0_2, %c0_3], %3 {strides = array<i32>} : memref<1x2048xf32, #tpu.memory_space<vmem>>, vector<1x2048xf32>,
    return
  }
  func.func @transform_0(%arg0: i32, %arg1: memref<1xf32, #tpu.memory_space<smem>>) -> (i32, i32) {
    %c0_i32 = arith.constant 0 : i32
    %c0_i32_0 = arith.constant 0 : i32
    return %arg0, %c0_i32 : i32, i32
  }
  func.func @transform_1(%arg0: i32, %arg1: memref<1xf32, #tpu.memory_space<smem>>) -> (i32, i32) {
    %c0_i32 = arith.constant 0 : i32
    %c0_i32_0 = arith.constant 0 : i32
    return %arg0, %c0_i32 : i32, i32
  }
}

</mosaic_0001>

<llo_original>
// kernel: tpu_custom_call.1
$region0: #{tpu_custom_call.1}
  #allocation0 [shape = 'u32[]', space=smem, size = 0x4, offset = 0x4, fixed_abs, tag = 'smem constant byte address 0x4 - core index']
  #allocation1 [shape = 'u32[144,128]{1,0:T(1,128)}', space=vmem, size = 0x12000, scoped, tag = 'internal scratch']
  #allocation2 [shape = 's32[1]{0}', space=sflag, size = 0x4, scoped, tag = 'scoped memory for tpu_custom_call.1']
  #allocation3 [shape = 'f32[1]{0:T(128)S(6)}', space=smem, size = 0x200, scoped, tag = 'prefetched SMEM operand 0']
  %s0 = inlined_call_operand.<no memory space> [shape: f32[1], index: 0, kind: input, shape index: {}]
  %s1 = inlined_call_operand.hbm [shape: f32[1,2048], index: 1, kind: input, shape index: {}]
  %s2 = inlined_call_operand.hbm [shape: f32[1,2048], index: 2, kind: output, shape index: {}]
  %s3 = sld [smem:[#allocation0]]
  $region18: #{tpu_custom_call.1} parent=0
    _
  %s5 = ssub.s32 1, %s3
  %s6 = scalar_select 0, %s5, %s3
  %7 = sst [smem:[#allocation3]] %s0
  $region1: #{tpu_custom_call.1} parent=0
    #allocation4 [shape = 'u8[8192]{0}', space=vmem, size = 0x2000, scoped, tag = 'input window, operand 1, single buffered']
    #allocation5 [shape = 's32[1]{0}', space=sflag, size = 0x4, scoped, tag = 'scoped memory for tpu_custom_call.1']
    #allocation6 [shape = 's32[1]{0}', space=sflag, size = 0x4, scoped, tag = 'scoped memory for tpu_custom_call.1']
    #allocation7 [shape = 'u8[8192]{0}', space=vmem, size = 0x2000, scoped, tag = 'output window, operand 0, single buffered']
    %8 = vsyncpa [#allocation5], 0
    %9 = vsyncpa [#allocation6], 0
    // Predicated region
    $region2: #{tpu_custom_call.1} parent=1 // pred_check
      _
    $region3: #{tpu_custom_call.1} parent=1 // pred_check_branch
      %11 = sbr.rel (0) target = $region5
    $region4: #{tpu_custom_call.1} parent=1 // pred_region
      %s13 = ssub.s32 256, 256
      %14 = vsyncadd [#allocation5], %s13
      %s16 = sshll.u32 [#allocation4], 4
      %s17 = int_to_ptr.vmem [resolvable:$true] %s16
      %19 = dma.hbm_to_vmem [thread:$0]  %s1, 256, %s17, [#allocation5]
    $region5: #{tpu_custom_call.1} parent=1 // pred_fallthru
      _
    // Predicated region
    $region6: #{tpu_custom_call.1} parent=1 // pred_check
      _
    $region7: #{tpu_custom_call.1} parent=1 // pred_check_branch
      %21 = sbr.rel (0) target = $region9
    $region8: #{tpu_custom_call.1} parent=1 // pred_region
      %22 = dma.done [#allocation5], 256
    $region9: #{tpu_custom_call.1} parent=1 // pred_fallthru
      _
    %s23 = sld [smem:[#allocation3]]
    %v24 = vld [vmem:[#allocation4] sm:$0xff]
    %v25 = vld [vmem:[#allocation4 + $0x8] sm:$0xff]
    %v26 = vstv %s23
    %v27 = vmul.f32 %v24, %v26
    %v28 = vmul.f32 %v25, %v26
    %29 = vst [vmem:[#allocation7] sm:$0xff] %v27
    %30 = vst [vmem:[#allocation7 + $0x8] sm:$0xff] %v28
    // Predicated region
    $region10: #{tpu_custom_call.1} parent=1 // pred_check
      _
    $region11: #{tpu_custom_call.1} parent=1 // pred_check_branch
      %32 = sbr.rel (0) target = $region13
    $region12: #{tpu_custom_call.1} parent=1 // pred_region
      %s34 = ssub.s32 256, 256
      %35 = vsyncadd [#allocation6], %s34
      %s37 = sshll.u32 [#allocation7], 4
      %s38 = int_to_ptr.vmem [resolvable:$true] %s37
      %40 = dma.vmem_to_hbm [thread:$0]  %s38, 256, %s2, [#allocation6]
    $region13: #{tpu_custom_call.1} parent=1 // pred_fallthru
      _
    // Predicated region
    $region14: #{tpu_custom_call.1} parent=1 // pred_check
      _
    $region15: #{tpu_custom_call.1} parent=1 // pred_check_branch
      %42 = sbr.rel (0) target = $region17
    $region16: #{tpu_custom_call.1} parent=1 // pred_region
      %43 = dma.done [#allocation6], 256
    $region17: #{tpu_custom_call.1} parent=1 // pred_fallthru
      _
    %44 = vsyncpa [#allocation5], 1
    %45 = vsyncpa [#allocation6], 1

</llo_original>
